<compile_context>
chip_gen: v6e
topology: v6e:2x2x1
jax: 0.10.0
libtpu: 0.0.40
codegen_flags: <defaults>
</compile_context>

<pallas_src>
import jax
import jax.numpy as jnp
from jax.experimental import pallas as pl
from jax.experimental.pallas import tpu as pltpu


def _round_up(x, m):
    return ((x + m - 1) // m) * m


def _nll_kernel(pred_ref, tgt_ref, out_ref, sum_ref, cnt_ref):
    i = pl.program_id(0)

    @pl.when(i == 0)
    def _():
        sum_ref[...] = jnp.zeros_like(sum_ref)
        cnt_ref[...] = jnp.zeros_like(cnt_ref)

    x = pred_ref[...].astype(jnp.float32)                     # [C, tn] log-probs
    t = tgt_ref[...]                                          # [1, tn] int32
    cls = jax.lax.broadcasted_iota(jnp.int32, x.shape, 0)     # class index per sublane
    valid = t >= 0                                            # [1, tn]; negative = pad / ignore
    hit = (cls == t) & valid                                  # [C, tn] one-hot of target class
    picked = jnp.where(hit, x, 0.0)

    # partial -sum of selected log-probs and #valid positions for this tile
    tile_sum = jnp.sum(jnp.sum(picked, axis=0, keepdims=True),
                       axis=1, keepdims=True)                 # (1, 1)
    tile_cnt = jnp.sum(valid.astype(jnp.float32),
                       axis=1, keepdims=True)                 # (1, 1)
    sum_ref[...] += -tile_sum
    cnt_ref[...] += tile_cnt

    @pl.when(i == pl.num_programs(0) - 1)
    def _():
        out_ref[...] = sum_ref[...] / cnt_ref[...]


def nll_loss(pred, target, *, tile_cols=1024):
    """F.nll_loss(pred, target) with reduction='mean' (PyTorch defaults).

    pred:   [N, C] or [B, C, d1, ...] log-probabilities (any float dtype).
    target: [N]    or [B, d1, ...]    integer class indices.
    Negative targets (covers PyTorch's default ignore_index=-100 and the
    in-kernel padding sentinel) are excluded from both the sum and the count.
    """
    if pred.ndim == 2:
        # [M, C] -> [C, M]
        pred_cm = jnp.transpose(pred, (1, 0))
    else:
        # [B, C, d1, ...] -> [B, C, P] -> [C, B, P] -> [C, B*P]
        B, C = pred.shape[0], pred.shape[1]
        pred_cm = jnp.transpose(pred.reshape(B, C, -1), (1, 0, 2)).reshape(C, -1)
    tgt = target.reshape(-1).astype(jnp.int32)

    C, M = pred_cm.shape
    tn = min(tile_cols, _round_up(M, 128))
    Mp = _round_up(M, tn)

    pred_p = jnp.pad(pred_cm, ((0, 0), (0, Mp - M)))
    tgt_p = jnp.pad(tgt, (0, Mp - M), constant_values=-1).reshape(1, Mp)

    out = pl.pallas_call(
        _nll_kernel,
        out_shape=jax.ShapeDtypeStruct((1, 1), jnp.float32),
        grid_spec=pltpu.PrefetchScalarGridSpec(
            num_scalar_prefetch=0,
            grid=(Mp // tn,),
            in_specs=[
                pl.BlockSpec((C, tn), lambda i: (0, i)),
                pl.BlockSpec((1, tn), lambda i: (0, i)),
            ],
            out_specs=pl.BlockSpec((1, 1), lambda i: (0, 0)),
            scratch_shapes=[pltpu.VMEM((1, 1), jnp.float32),
                            pltpu.VMEM((1, 1), jnp.float32)],
        ),
        compiler_params=pltpu.CompilerParams(
            dimension_semantics=("arbitrary",)),  # position axis is a reduction
    )(pred_p, tgt_p)
    return out[0, 0]


if __name__ == "__main__":
    # Small shapes consistent with the segmentation model feeding get_loss:
    # pred = log-probabilities [B, cls_dim, N_points], target = [B, N_points].
    B, CLS_DIM, N = 2, 16, 256
    key = jax.random.PRNGKey(0)
    k1, k2 = jax.random.split(key)
    logits = jax.random.normal(k1, (B, CLS_DIM, N), jnp.float32)
    pred = jax.nn.log_softmax(logits, axis=1)                       # [B, C, N]
    target = jax.random.randint(k2, (B, N), 0, CLS_DIM, dtype=jnp.int32)

    loss = jax.jit(nll_loss)(pred, target)
    loss = jax.block_until_ready(loss)

    # pure-JAX reference (== torch.nn.functional.nll_loss with defaults)
    rows = jnp.transpose(pred, (0, 2, 1)).reshape(-1, CLS_DIM)
    ref = -jnp.mean(jnp.take_along_axis(rows, target.reshape(-1, 1), axis=1))

    assert loss.shape == (), loss.shape
    assert bool(jnp.isfinite(loss)), loss
    assert abs(float(loss) - float(ref)) < 1e-5, (float(loss), float(ref))

    # also exercise the 2D [M, C] path (the usual part-seg call signature)
    rows2 = rows
    tgt2 = target.reshape(-1)
    loss2 = jax.block_until_ready(jax.jit(nll_loss)(rows2, tgt2))
    assert abs(float(loss2) - float(ref)) < 1e-5, (float(loss2), float(ref))

    print("KERNEL_OK")
</pallas_src>

<mosaic_0001>
module attributes {stable_mosaic.version = 11 : i64} {
  func.func @_nll_kernel(%arg0: i32, %arg1: memref<16x512xf32, #tpu.memory_space<vmem>>, %arg2: memref<1x512xi32, #tpu.memory_space<vmem>>, %arg3: memref<1x1xf32, #tpu.memory_space<vmem>>, %arg4: memref<1x1xf32, #tpu.memory_space<vmem>>, %arg5: memref<1x1xf32, #tpu.memory_space<vmem>>) attributes {dimension_semantics = [#tpu.dimension_semantics<arbitrary>], iteration_bounds = array<i64: 1>, scalar_prefetch = 0 : i64, scratch_operands = 2 : i64, tpu.core_type = #tpu.core_type<tc>, window_params = [{transform_indices = @transform_0, window_bounds = array<i64: 16, 512>}, {transform_indices = @transform_1, window_bounds = array<i64: 1, 512>}, {pipeline_mode = #tpu.pipeline_mode<synchronous>, transform_indices = @transform_2, window_bounds = array<i64: 1, 1>}]} {
    %c0_i32 = arith.constant 0 : i32
    %0 = arith.cmpi eq, %arg0, %c0_i32 : i32
    %1 = arith.extui %0 : i1 to i32
    %c0_i32_0 = arith.constant 0 : i32
    %2 = arith.cmpi ne, %1, %c0_i32_0 : i32
    scf.if %2 {
      %cst_19 = arith.constant 0.000000e+00 : f32
      %33 = vector.broadcast %cst_19 : f32 to vector<1x1xf32>
      %c0_20 = arith.constant 0 : index
      %c0_21 = arith.constant 0 : index
      %34 = vector.load %arg4[%c0_20, %c0_21] : memref<1x1xf32, #tpu.memory_space<vmem>>, vector<1x1xf32>
      tpu.vector_store %arg4[%c0_20, %c0_21], %33 {strides = array<i32>} : memref<1x1xf32, #tpu.memory_space<vmem>>, vector<1x1xf32>,
      %cst_22 = arith.constant 0.000000e+00 : f32
      %35 = vector.broadcast %cst_22 : f32 to vector<1x1xf32>
      %c0_23 = arith.constant 0 : index
      %c0_24 = arith.constant 0 : index
      %36 = vector.load %arg5[%c0_23, %c0_24] : memref<1x1xf32, #tpu.memory_space<vmem>>, vector<1x1xf32>
      tpu.vector_store %arg5[%c0_23, %c0_24], %35 {strides = array<i32>} : memref<1x1xf32, #tpu.memory_space<vmem>>, vector<1x1xf32>,
    } else {
    }
    %c0 = arith.constant 0 : index
    %c0_1 = arith.constant 0 : index
    %3 = vector.load %arg1[%c0, %c0_1] : memref<16x512xf32, #tpu.memory_space<vmem>>, vector<16x512xf32>
    %c0_2 = arith.constant 0 : index
    %c0_3 = arith.constant 0 : index
    %4 = vector.load %arg2[%c0_2, %c0_3] : memref<1x512xi32, #tpu.memory_space<vmem>>, vector<1x512xi32>
    %5 = tpu.iota {dimensions = array<i32: 0>} : vector<16x512xi32>
    %c0_i32_4 = arith.constant 0 : i32
    %6 = vector.broadcast %c0_i32_4 : i32 to vector<1x512xi32>
    %7 = arith.cmpi sge, %4, %6 : vector<1x512xi32>
    %8 = vector.broadcast %4 : vector<1x512xi32> to vector<16x512xi32>
    %9 = arith.cmpi eq, %5, %8 : vector<16x512xi32>
    %10 = vector.broadcast %7 : vector<1x512xi1> to vector<16x512xi1>
    %11 = arith.andi %9, %10 : vector<16x512xi1>
    %cst = arith.constant 0.000000e+00 : f32
    %12 = vector.broadcast %cst : f32 to vector<16x512xf32>
    %13 = arith.select %11, %3, %12 : vector<16x512xi1>, vector<16x512xf32>
    %cst_5 = arith.constant dense<0.000000e+00> : vector<512xf32>
    %14 = vector.multi_reduction <add>, %13, %cst_5 [0] : vector<16x512xf32> to vector<512xf32>
    %15 = vector.shape_cast %14 : vector<512xf32> to vector<1x512xf32>
    %cst_6 = arith.constant dense<0.000000e+00> : vector<1xf32>
    %16 = vector.multi_reduction <add>, %15, %cst_6 [1] : vector<1x512xf32> to vector<1xf32>
    %17 = vector.shape_cast %16 : vector<1xf32> to vector<1x1xf32>
    %18 = arith.extui %7 : vector<1x512xi1> to vector<1x512xi32>
    %19 = arith.sitofp %18 : vector<1x512xi32> to vector<1x512xf32>
    %cst_7 = arith.constant dense<0.000000e+00> : vector<1xf32>
    %20 = vector.multi_reduction <add>, %19, %cst_7 [1] : vector<1x512xf32> to vector<1xf32>
    %21 = vector.shape_cast %20 : vector<1xf32> to vector<1x1xf32>
    %c0_8 = arith.constant 0 : index
    %c0_9 = arith.constant 0 : index
    %22 = vector.load %arg4[%c0_8, %c0_9] : memref<1x1xf32, #tpu.memory_space<vmem>>, vector<1x1xf32>
    %cst_10 = arith.constant 0.000000e+00 : f32
    %23 = vector.broadcast %cst_10 : f32 to vector<1x1xf32>
    %24 = arith.subf %23, %17 : vector<1x1xf32>
    %25 = arith.addf %22, %24 : vector<1x1xf32>
    %c0_11 = arith.constant 0 : index
    %c0_12 = arith.constant 0 : index
    %26 = vector.load %arg4[%c0_11, %c0_12] : memref<1x1xf32, #tpu.memory_space<vmem>>, vector<1x1xf32>
    tpu.vector_store %arg4[%c0_11, %c0_12], %25 {strides = array<i32>} : memref<1x1xf32, #tpu.memory_space<vmem>>, vector<1x1xf32>,
    %c0_13 = arith.constant 0 : index
    %c0_14 = arith.constant 0 : index
    %27 = vector.load %arg5[%c0_13, %c0_14] : memref<1x1xf32, #tpu.memory_space<vmem>>, vector<1x1xf32>
    %28 = arith.addf %27, %21 : vector<1x1xf32>
    %c0_15 = arith.constant 0 : index
    %c0_16 = arith.constant 0 : index
    %29 = vector.load %arg5[%c0_15, %c0_16] : memref<1x1xf32, #tpu.memory_space<vmem>>, vector<1x1xf32>
    tpu.vector_store %arg5[%c0_15, %c0_16], %28 {strides = array<i32>} : memref<1x1xf32, #tpu.memory_space<vmem>>, vector<1x1xf32>,
    %c0_i32_17 = arith.constant 0 : i32
    %30 = arith.cmpi eq, %arg0, %c0_i32_17 : i32
    %31 = arith.extui %30 : i1 to i32
    %c0_i32_18 = arith.constant 0 : i32
    %32 = arith.cmpi ne, %31, %c0_i32_18 : i32
    scf.if %32 {
      %c0_19 = arith.constant 0 : index
      %c0_20 = arith.constant 0 : index
      %33 = vector.load %arg4[%c0_19, %c0_20] : memref<1x1xf32, #tpu.memory_space<vmem>>, vector<1x1xf32>
      %c0_21 = arith.constant 0 : index
      %c0_22 = arith.constant 0 : index
      %34 = vector.load %arg5[%c0_21, %c0_22] : memref<1x1xf32, #tpu.memory_space<vmem>>, vector<1x1xf32>
      %35 = arith.divf %33, %34 : vector<1x1xf32>
      %c0_23 = arith.constant 0 : index
      %c0_24 = arith.constant 0 : index
      %36 = vector.load %arg3[%c0_23, %c0_24] : memref<1x1xf32, #tpu.memory_space<vmem>>, vector<1x1xf32>
      tpu.vector_store %arg3[%c0_23, %c0_24], %35 {strides = array<i32>} : memref<1x1xf32, #tpu.memory_space<vmem>>, vector<1x1xf32>,
    } else {
    }
    return
  }
  func.func @transform_0(%arg0: i32) -> (i32, i32) {
    %c0_i32 = arith.constant 0 : i32
    %c0_i32_0 = arith.constant 0 : i32
    return %c0_i32, %arg0 : i32, i32
  }
  func.func @transform_1(%arg0: i32) -> (i32, i32) {
    %c0_i32 = arith.constant 0 : i32
    %c0_i32_0 = arith.constant 0 : i32
    return %c0_i32, %arg0 : i32, i32
  }
  func.func @transform_2(%arg0: i32) -> (i32, i32) {
    %c0_i32 = arith.constant 0 : i32
    %c0_i32_0 = arith.constant 0 : i32
    %c0_i32_1 = arith.constant 0 : i32
    return %c0_i32, %c0_i32_0 : i32, i32
  }
}

</mosaic_0001>

<llo_original>
// kernel: nll_loss.1
$region0: #{nll_loss.1}
  #allocation0 [shape = 'u32[]', space=smem, size = 0x4, offset = 0x4, fixed_abs, tag = 'smem constant byte address 0x4 - core index']
  #allocation1 [shape = 'u32[144,128]{1,0:T(1,128)}', space=vmem, size = 0x12000, scoped, tag = 'internal scratch']
  #allocation2 [shape = 'f32[1,1]{1,0:T(1,128)}', space=vmem, size = 0x200, scoped, tag = 'scratch operand']
  #allocation3 [shape = 'f32[1,1]{1,0:T(1,128)}', space=vmem, size = 0x200, scoped, tag = 'scratch operand']
  %s0 = inlined_call_operand.vmem [shape: f32[16,512], index: 0, kind: input, shape index: {}]
  %s1 = inlined_call_operand.vmem [shape: s32[1,512], index: 1, kind: input, shape index: {}]
  %s2 = inlined_call_operand.hbm [shape: f32[1,1], index: 2, kind: output, shape index: {}]
  %s3 = sld [smem:[#allocation0]]
  $region26: #{nll_loss.1} parent=0
    _
  %s5 = ssub.s32 1, %s3
  %s6 = scalar_select 0, %s5, %s3
  $region1: #{nll_loss.1} parent=0
    #allocation4 [shape = 'u8[512]{0}', space=vmem, size = 0x400, scoped, tag = 'output window, operand 0, single buffered']
    #allocation5 [shape = 's32[1]{0}', space=sflag, size = 0x4, scoped, tag = 'scoped memory for nll_loss.1']
    %7 = vsyncpa [#allocation5], 0
    // Predicated region
    $region2: #{nll_loss.1} parent=1 // pred_check
      _
    $region3: #{nll_loss.1} parent=1 // pred_check_branch
      %9 = sbr.rel (0) target = $region5
    $region4: #{nll_loss.1} parent=1 // pred_region
      _
    $region5: #{nll_loss.1} parent=1 // pred_fallthru
      _
    // Predicated region
    $region6: #{nll_loss.1} parent=1 // pred_check
      _
    $region7: #{nll_loss.1} parent=1 // pred_check_branch
      %11 = sbr.rel (0) target = $region9
    $region8: #{nll_loss.1} parent=1 // pred_region
      _
    $region9: #{nll_loss.1} parent=1 // pred_fallthru
      _
    %p12 = scmp.eq.s32.totalorder 0, 0
    // Predicated region
    $region10: #{nll_loss.1} parent=1 // pred_check
      %p13 = pneg %p12
    $region11: #{nll_loss.1} parent=1 // pred_check_branch
      %15 = sbr.rel (%p13) target = $region13
    $region12: #{nll_loss.1} parent=1 // pred_region
      %vm16 = vcmask 0
      %17 = vst.msk [vmem:[#allocation2] sm:$0x1] %vm16, 0.0
      %18 = vst.msk [vmem:[#allocation3] sm:$0x1] %vm16, 0.0
    $region13: #{nll_loss.1} parent=1 // pred_fallthru
      _
    %v19 = vld [vmem:[%s0] sm:$0xff]
    %v20 = vld [vmem:[%s0 + $0x8] sm:$0xff]
    %v21 = vld [vmem:[%s0 + $0x10] sm:$0xff]
    %v22 = vld [vmem:[%s0 + $0x18] sm:$0xff]
    %v23 = vld [vmem:[%s0 + $0x20] sm:$0xff]
    %v24 = vld [vmem:[%s0 + $0x28] sm:$0xff]
    %v25 = vld [vmem:[%s0 + $0x30] sm:$0xff]
    %v26 = vld [vmem:[%s0 + $0x38] sm:$0xff]
    %v27 = vld [vmem:[%s1] sm:$0xf]
    %v28 = vlaneseq
    %v29 = vshrl.u32 %v28, 7
    %v30 = vadd.s32 %v29, 8
    %vm31 = vcmp.ge.s32.totalorder %v27, 0
    %v32 = vlaneseq
    %v33 = vshrl.u32 %v32, 7
    %v34 = vsub.s32 0, %v33
    %v35 = vrot.slane %v27, %v34
    %v36 = vlaneseq
    %v37 = vshrl.u32 %v36, 7
    %v38 = vsub.s32 1, %v37
    %v39 = vrot.slane %v27, %v38
    %v40 = vlaneseq
    %v41 = vshrl.u32 %v40, 7
    %v42 = vsub.s32 2, %v41
    %v43 = vrot.slane %v27, %v42
    %v44 = vlaneseq
    %v45 = vshrl.u32 %v44, 7
    %v46 = vsub.s32 3, %v45
    %v47 = vrot.slane %v27, %v46
    %vm48 = vcmp.eq.s32.totalorder %v29, %v35
    %vm49 = vcmp.eq.s32.totalorder %v29, %v39
    %vm50 = vcmp.eq.s32.totalorder %v29, %v43
    %vm51 = vcmp.eq.s32.totalorder %v29, %v47
    %vm52 = vcmp.eq.s32.totalorder %v30, %v35
    %vm53 = vcmp.eq.s32.totalorder %v30, %v39
    %vm54 = vcmp.eq.s32.totalorder %v30, %v43
    %vm55 = vcmp.eq.s32.totalorder %v30, %v47
    %v56 = vsel %vm31, 1, 0
    %v57 = vlaneseq
    %v58 = vshrl.u32 %v57, 7
    %v59 = vsub.s32 0, %v58
    %v60 = vrot.slane %v56, %v59
    %v61 = vlaneseq
    %v62 = vshrl.u32 %v61, 7
    %v63 = vsub.s32 1, %v62
    %v64 = vrot.slane %v56, %v63
    %v65 = vlaneseq
    %v66 = vshrl.u32 %v65, 7
    %v67 = vsub.s32 2, %v66
    %v68 = vrot.slane %v56, %v67
    %v69 = vlaneseq
    %v70 = vshrl.u32 %v69, 7
    %v71 = vsub.s32 3, %v70
    %v72 = vrot.slane %v56, %v71
    %vm73 = vcmp.eq.s32.totalorder %v60, 1
    %vm74 = vcmp.eq.s32.totalorder %v64, 1
    %vm75 = vcmp.eq.s32.totalorder %v68, 1
    %vm76 = vcmp.eq.s32.totalorder %v72, 1
    %vm77 = vmand %vm48, %vm73
    %vm78 = vmand %vm49, %vm74
    %vm79 = vmand %vm50, %vm75
    %vm80 = vmand %vm51, %vm76
    %vm81 = vmand %vm52, %vm73
    %vm82 = vmand %vm53, %vm74
    %vm83 = vmand %vm54, %vm75
    %vm84 = vmand %vm55, %vm76
    %v85 = vsel %vm77, %v19, 0.0
    %v86 = vsel %vm78, %v20, 0.0
    %v87 = vsel %vm79, %v21, 0.0
    %v88 = vsel %vm80, %v22, 0.0
    %v89 = vsel %vm81, %v23, 0.0
    %v90 = vsel %vm82, %v24, 0.0
    %v91 = vsel %vm83, %v25, 0.0
    %v92 = vsel %vm84, %v26, 0.0
    %v93 = vadd.f32 %v85, %v89
    %v94 = vrot.slane %v93, 4
    %v95 = vadd.f32 %v93, %v94
    %v96 = vrot.slane %v95, 2
    %v97 = vadd.f32 %v95, %v96
    %v98 = vrot.slane %v97, 1
    %v99 = vadd.f32 %v97, %v98
    %v100 = vadd.f32 %v86, %v90
    %v101 = vrot.slane %v100, 4
    %v102 = vadd.f32 %v100, %v101
    %v103 = vrot.slane %v102, 2
    %v104 = vadd.f32 %v102, %v103
    %v105 = vrot.slane %v104, 1
    %v106 = vadd.f32 %v104, %v105
    %v107 = vadd.f32 %v87, %v91
    %v108 = vrot.slane %v107, 4
    %v109 = vadd.f32 %v107, %v108
    %v110 = vrot.slane %v109, 2
    %v111 = vadd.f32 %v109, %v110
    %v112 = vrot.slane %v111, 1
    %v113 = vadd.f32 %v111, %v112
    %v114 = vadd.f32 %v88, %v92
    %v115 = vrot.slane %v114, 4
    %v116 = vadd.f32 %v114, %v115
    %v117 = vrot.slane %v116, 2
    %v118 = vadd.f32 %v116, %v117
    %v119 = vrot.slane %v118, 1
    %v120 = vadd.f32 %v118, %v119
    %v121 = vadd.f32 %v99, %v106
    %v122 = vadd.f32 %v121, %v113
    %v123 = vadd.f32 %v122, %v120
    %124 = vadd.xlane.f32.xlu0 %v123
    %v125 = vpop.xlane.xlu0 %124
    %v126 = vcvt.s32.f32 %v56
    %v128 = vlaneseq
    %v129 = vshrl.u32 %v128, 7
    %v130 = vsub.s32 0, %v129
    %v131 = vrot.slane %v126, %v130
    %v132 = vlaneseq
    %v133 = vshrl.u32 %v132, 7
    %v134 = vsub.s32 1, %v133
    %v135 = vrot.slane %v126, %v134
    %v136 = vlaneseq
    %v137 = vshrl.u32 %v136, 7
    %v138 = vsub.s32 2, %v137
    %v139 = vrot.slane %v126, %v138
    %v140 = vlaneseq
    %v141 = vshrl.u32 %v140, 7
    %v142 = vsub.s32 3, %v141
    %v143 = vrot.slane %v126, %v142
    %vm148 = vcmask 1040384
    %v149 = vsel %vm148, %v131, 0.0
    %v150 = vsel %vm148, %v135, 0.0
    %v151 = vadd.f32 %v149, %v150
    %v152 = vsel %vm148, %v139, 0.0
    %v153 = vadd.f32 %v151, %v152
    %v154 = vsel %vm148, %v143, 0.0
    %v155 = vadd.f32 %v153, %v154
    %156 = vadd.xlane.f32.xlu0 %v155
    %v157 = vpop.xlane.xlu0 %156
    %v158 = vld [vmem:[#allocation2] sm:$0x1]
    %v159 = vsub.f32 0.0, %v125
    %v160 = vadd.f32 %v158, %v159
    %vm161 = vcmask 0
    %162 = vst.msk [vmem:[#allocation2] sm:$0x1] %vm161, %v160
    %v163 = vld [vmem:[#allocation3] sm:$0x1]
    %v164 = vadd.f32 %v163, %v157
    %165 = vst.msk [vmem:[#allocation3] sm:$0x1] %vm161, %v164
    // Predicated region
    $region14: #{nll_loss.1} parent=1 // pred_check
      %p166 = pneg %p12
    $region15: #{nll_loss.1} parent=1 // pred_check_branch
      %168 = sbr.rel (%p166) target = $region17
    $region16: #{nll_loss.1} parent=1 // pred_region
      %v169 = vld [vmem:[#allocation2] sm:$0x1]
      %v170 = vld [vmem:[#allocation3] sm:$0x1]
      %v171 = vrcp.pop %v170
      %v172 = vmul.f32 %v169, %v171
      %173 = vst.msk [vmem:[#allocation4] sm:$0x1] %vm161, %v172
    $region17: #{nll_loss.1} parent=1 // pred_fallthru
      _
    // Predicated region
    $region18: #{nll_loss.1} parent=1 // pred_check
      _
    $region19: #{nll_loss.1} parent=1 // pred_check_branch
      %175 = sbr.rel (0) target = $region21
    $region20: #{nll_loss.1} parent=1 // pred_region
      %s177 = ssub.s32 16, 16
      %178 = vsyncadd [#allocation5], %s177
      %s180 = sshll.u32 [#allocation4], 4
      %s181 = int_to_ptr.vmem [resolvable:$true] %s180
      %183 = dma.vmem_to_hbm [thread:$0]  %s181, 16, %s2, [#allocation5]
    $region21: #{nll_loss.1} parent=1 // pred_fallthru
      _
    // Predicated region
    $region22: #{nll_loss.1} parent=1 // pred_check
      _
    $region23: #{nll_loss.1} parent=1 // pred_check_branch
      %185 = sbr.rel (0) target = $region25
    $region24: #{nll_loss.1} parent=1 // pred_region
      %186 = dma.done [#allocation5], 16
    $region25: #{nll_loss.1} parent=1 // pred_fallthru
      _
    %187 = vsyncpa [#allocation5], 1

</llo_original>
